<compile_context>
chip_gen: v5e
topology: v5e:2x2
jax: 0.10.0
libtpu: 0.0.40
codegen_flags: <defaults>
</compile_context>

<pallas_src>
import jax
import jax.numpy as jnp
from jax import lax
from jax.experimental import pallas as pl
from jax.experimental.pallas import tpu as pltpu

STATE_DIM = 150   # raw state width (kernel contracts K=150 directly)
ZS_DIM = 256
HID = 256


def _round_up(x, m):
    return ((x + m - 1) // m) * m


def _elu(x):
    # F.elu (alpha=1); exp only sees the clamped-negative branch.
    return jnp.where(x > 0, x, jnp.exp(jnp.minimum(x, 0.0)) - 1.0)


def v_critic_kernel(state_ref, zs_ref, w_ref, b_ref, out_ref):
    # Activations cast to bf16 only at MXU inputs; accumulation in f32.
    x = state_ref[...].astype(jnp.bfloat16)      # (tb, 150) natural width
    zs = zs_ref[...].astype(jnp.bfloat16)        # (tb, 256)

    # Static views into the packed bf16 weight slab (256-row aligned blocks;
    # w01 only uses its first 150 rows — the rest of that block is zero).
    w01 = w_ref[0:STATE_DIM, :]                  # (150, 256)
    w1a = w_ref[1 * HID:2 * HID, :]              # W1 rows that multiply AvgL1Norm(v01)
    w1z = w_ref[2 * HID:3 * HID, :]              # W1 rows that multiply zs
    w2 = w_ref[3 * HID:4 * HID, :]

    b01 = b_ref[0:1, :]
    b1 = b_ref[1:2, :]
    b2 = b_ref[2:3, :]
    w3 = b_ref[3:4, :]                           # final layer weight as a row vector
    b3 = b_ref[4:5, :][:, 0:1]                   # final bias as (1, 1)

    # v01 + AvgL1Norm (f32).  h / max(mean|h|, 1e-8)
    #   == h * 256 * rcp(max(sum|h|, 256 * 1e-8))   (EUP approx reciprocal)
    h = jnp.dot(x, w01, preferred_element_type=jnp.float32) + b01
    ssum = jnp.sum(jnp.abs(h), axis=-1, keepdims=True)
    inv = pl.reciprocal(jnp.maximum(ssum, HID * 1e-8), approx=True)
    h = h * (inv * float(HID))

    # v1 on cat([h, zs], 1)  ==  h @ W1_a + zs @ W1_z  (no in-kernel concat)
    h = (jnp.dot(h.astype(jnp.bfloat16), w1a, preferred_element_type=jnp.float32)
         + jnp.dot(zs, w1z, preferred_element_type=jnp.float32)
         + b1)
    h = _elu(h)

    # v2
    h = jnp.dot(h.astype(jnp.bfloat16), w2, preferred_element_type=jnp.float32) + b2
    h = _elu(h)

    # v3: Linear(256, 1) as an "NT" matmul (contract last dims of both
    # operands, like q @ k^T) -> natively lane-dense (1, tb) row.
    v3 = lax.dot_general(
        w3.astype(jnp.bfloat16), h.astype(jnp.bfloat16),
        (((1,), (1,)), ((), ())),
        preferred_element_type=jnp.float32)      # (1, tb)
    out_ref[0] = v3 + b3


def _pick_tb(B):
    if B <= 256:
        return max(8, _round_up(B, 8))           # single grid step
    # Big batches: large tiles (step overhead amortized), but keep >= 2 grid
    # steps so the "parallel" batch axis can be sharded across 2 TCs on v7x.
    return min(512, _round_up(pl.cdiv(B, 2), 8))


def v_critic_forward(state, zs, kparams, tb=None):
    """state: (B, STATE_DIM), zs: (B, 256) -> (B, 1) f32."""
    w_slab, b_slab = kparams
    B, sdim = state.shape
    assert sdim == STATE_DIM, sdim
    assert zs.shape == (B, ZS_DIM), zs.shape

    if tb is None:
        tb = _pick_tb(B)
    tb = max(8, _round_up(tb, 8))
    num_tiles = pl.cdiv(B, tb)
    Bp = num_tiles * tb

    if Bp != B:  # rare ragged-batch path; math on zero rows is finite + discarded
        state = jnp.pad(state, ((0, Bp - B), (0, 0)))
        zs = jnp.pad(zs, ((0, Bp - B), (0, 0)))

    weight_bytes = w_slab.size * w_slab.dtype.itemsize + b_slab.size * 4
    act_bytes = Bp * (STATE_DIM + ZS_DIM) * state.dtype.itemsize + Bp * 4
    flops = 2 * Bp * (STATE_DIM * HID + 3 * HID * HID + HID)

    out = pl.pallas_call(
        v_critic_kernel,
        out_shape=jax.ShapeDtypeStruct((num_tiles, 1, tb), jnp.float32),
        grid_spec=pltpu.PrefetchScalarGridSpec(
            num_scalar_prefetch=0,
            grid=(num_tiles,),
            in_specs=[
                pl.BlockSpec((tb, STATE_DIM), lambda i: (i, 0)),      # state tile
                pl.BlockSpec((tb, ZS_DIM), lambda i: (i, 0)),         # zs tile
                pl.BlockSpec((4 * HID, HID), lambda i: (0, 0)),       # weight slab (resident)
                pl.BlockSpec((8, HID), lambda i: (0, 0)),             # bias slab (resident)
            ],
            out_specs=pl.BlockSpec((1, 1, tb), lambda i: (i, 0, 0)),  # lane-dense rows
        ),
        compiler_params=pltpu.CompilerParams(
            dimension_semantics=("parallel",),
        ),
        cost_estimate=pl.CostEstimate(
            flops=flops,
            transcendentals=2 * Bp * HID,
            bytes_accessed=weight_bytes + act_bytes,
        ),
    )(state, zs, w_slab, b_slab)

    return out.reshape(Bp, 1)[:B]


def init_params(key, state_dim=STATE_DIM):
    """PyTorch-style uniform(+-1/sqrt(fan_in)) init.

    Returns (kernel_params, raw_f32_params):
      kernel_params = (w_slab bf16 (1024,256), b_slab f32 (8,256))
      raw_f32_params = plain f32 matrices for the pure-JAX reference.
    """
    keys = iter(jax.random.split(key, 16))

    def lin(fan_in, fan_out):
        bound = 1.0 / float(fan_in) ** 0.5
        w = jax.random.uniform(next(keys), (fan_in, fan_out), jnp.float32, -bound, bound)
        b = jax.random.uniform(next(keys), (fan_out,), jnp.float32, -bound, bound)
        return w, b

    w01, b01 = lin(state_dim, HID)            # v01: Linear(state_dim, 256)
    w1, b1 = lin(HID + ZS_DIM, HID)           # v1 : Linear(512, 256), cat order [v01-normed, zs]
    w2, b2 = lin(HID, HID)                    # v2 : Linear(256, 256)
    w3, b3 = lin(HID, 1)                      # v3 : Linear(256, 1)

    # Pack weights: w01 in a 256-row block (rows state_dim..255 zero, keeps the
    # following blocks tile-aligned), then W1 split into its two halves, then W2.
    w01_pad = jnp.zeros((HID, HID), jnp.float32).at[:state_dim, :].set(w01)
    w_slab = jnp.concatenate([w01_pad, w1[:HID], w1[HID:], w2], axis=0).astype(jnp.bfloat16)

    b_slab = jnp.zeros((8, HID), jnp.float32)
    b_slab = b_slab.at[0].set(b01)
    b_slab = b_slab.at[1].set(b1)
    b_slab = b_slab.at[2].set(b2)
    b_slab = b_slab.at[3].set(w3[:, 0])                   # final weight as a row
    b_slab = b_slab.at[4].set(jnp.full((HID,), b3[0]))    # final bias replicated

    kernel_params = (w_slab, b_slab)
    raw = (w01, b01, w1, b1, w2, b2, w3, b3)
    return kernel_params, raw


def reference_forward(state, zs, raw):
    """Pure-JAX f32 reference mirroring the PyTorch V_Critic.forward."""
    w01, b01, w1, b1, w2, b2, w3, b3 = raw
    v = state @ w01 + b01
    v = v / jnp.maximum(jnp.mean(jnp.abs(v), axis=-1, keepdims=True), 1e-8)
    v = jnp.concatenate([v, zs], axis=1)
    v = jax.nn.elu(v @ w1 + b1)
    v = jax.nn.elu(v @ w2 + b2)
    return v @ w3 + b3


if __name__ == "__main__":
    key = jax.random.PRNGKey(0)
    k_state, k_zs, k_params = jax.random.split(key, 3)

    B = 16
    state = jax.random.normal(k_state, (B, STATE_DIM), jnp.float32)
    zs = jax.random.normal(k_zs, (B, ZS_DIM), jnp.float32)

    kernel_params, raw_params = init_params(k_params)

    out = jax.block_until_ready(v_critic_forward(state, zs, kernel_params))
    ref = reference_forward(state, zs, raw_params)

    assert out.shape == (B, 1), out.shape
    # bf16 weights / bf16 matmul inputs / approx reciprocal -> relaxed tolerance
    # vs the f32 reference.
    assert jnp.allclose(out, ref, rtol=3e-2, atol=3e-2), (out, ref)

    print("KERNEL_OK")
</pallas_src>

<mosaic_0001>
module attributes {stable_mosaic.version = 11 : i64} {
  func.func @v_critic_kernel(%arg0: i32, %arg1: memref<16x150xf32, #tpu.memory_space<vmem>>, %arg2: memref<16x256xf32, #tpu.memory_space<vmem>>, %arg3: memref<1024x256xbf16, #tpu.memory_space<vmem>>, %arg4: memref<8x256xf32, #tpu.memory_space<vmem>>, %arg5: memref<1x1x16xf32, #tpu.memory_space<vmem>>) attributes {dimension_semantics = [#tpu.dimension_semantics<parallel>], iteration_bounds = array<i64: 1>, scalar_prefetch = 0 : i64, scratch_operands = 0 : i64, tpu.core_type = #tpu.core_type<tc>, window_params = [{transform_indices = @transform_0, window_bounds = array<i64: 16, 150>}, {transform_indices = @transform_1, window_bounds = array<i64: 16, 256>}, {pipeline_mode = #tpu.pipeline_mode<synchronous>, transform_indices = @transform_2, window_bounds = array<i64: 1024, 256>}, {pipeline_mode = #tpu.pipeline_mode<synchronous>, transform_indices = @transform_3, window_bounds = array<i64: 8, 256>}, {transform_indices = @transform_4, window_bounds = array<i64: 1, 1, 16>}]} {
    %c0 = arith.constant 0 : index
    %c0_0 = arith.constant 0 : index
    %0 = vector.load %arg1[%c0, %c0_0] : memref<16x150xf32, #tpu.memory_space<vmem>>, vector<16x150xf32>
    %1 = arith.truncf %0 : vector<16x150xf32> to vector<16x150xbf16>
    %c0_1 = arith.constant 0 : index
    %c0_2 = arith.constant 0 : index
    %2 = vector.load %arg2[%c0_1, %c0_2] : memref<16x256xf32, #tpu.memory_space<vmem>>, vector<16x256xf32>
    %3 = arith.truncf %2 : vector<16x256xf32> to vector<16x256xbf16>
    %c0_3 = arith.constant 0 : index
    %c0_4 = arith.constant 0 : index
    %4 = vector.load %arg3[%c0_3, %c0_4] : memref<1024x256xbf16, #tpu.memory_space<vmem>>, vector<150x256xbf16>
    %c256 = arith.constant 256 : index
    %c0_5 = arith.constant 0 : index
    %5 = vector.load %arg3[%c256, %c0_5] : memref<1024x256xbf16, #tpu.memory_space<vmem>>, vector<256x256xbf16>
    %c512 = arith.constant 512 : index
    %c0_6 = arith.constant 0 : index
    %6 = vector.load %arg3[%c512, %c0_6] : memref<1024x256xbf16, #tpu.memory_space<vmem>>, vector<256x256xbf16>
    %c768 = arith.constant 768 : index
    %c0_7 = arith.constant 0 : index
    %7 = vector.load %arg3[%c768, %c0_7] : memref<1024x256xbf16, #tpu.memory_space<vmem>>, vector<256x256xbf16>
    %c0_8 = arith.constant 0 : index
    %c0_9 = arith.constant 0 : index
    %8 = vector.load %arg4[%c0_8, %c0_9] : memref<8x256xf32, #tpu.memory_space<vmem>>, vector<1x256xf32>
    %c1 = arith.constant 1 : index
    %c0_10 = arith.constant 0 : index
    %9 = vector.load %arg4[%c1, %c0_10] : memref<8x256xf32, #tpu.memory_space<vmem>>, vector<1x256xf32>
    %c2 = arith.constant 2 : index
    %c0_11 = arith.constant 0 : index
    %10 = vector.load %arg4[%c2, %c0_11] : memref<8x256xf32, #tpu.memory_space<vmem>>, vector<1x256xf32>
    %c3 = arith.constant 3 : index
    %c0_12 = arith.constant 0 : index
    %11 = vector.load %arg4[%c3, %c0_12] : memref<8x256xf32, #tpu.memory_space<vmem>>, vector<1x256xf32>
    %c4 = arith.constant 4 : index
    %c0_13 = arith.constant 0 : index
    %12 = vector.load %arg4[%c4, %c0_13] : memref<8x256xf32, #tpu.memory_space<vmem>>, vector<1x256xf32>
    %13 = vector.extract_strided_slice %12 {offsets = [0, 0], sizes = [1, 1], strides = [1, 1]} : vector<1x256xf32> to vector<1x1xf32>
    %cst = arith.constant dense<0.000000e+00> : vector<16x256xf32>
    %14 = tpu.matmul %1, %4, %cst {dimension_numbers = #tpu.dot_dimension_numbers<[1], [0], [0], [1], [0, 0, 1, 1], [], []>} : vector<16x150xbf16>, vector<150x256xbf16>, vector<16x256xf32> -> vector<16x256xf32>
    %15 = vector.broadcast %8 : vector<1x256xf32> to vector<16x256xf32>
    %16 = arith.addf %14, %15 : vector<16x256xf32>
    %17 = math.absf %16 : vector<16x256xf32>
    %cst_14 = arith.constant dense<0.000000e+00> : vector<16xf32>
    %18 = vector.multi_reduction <add>, %17, %cst_14 [1] : vector<16x256xf32> to vector<16xf32>
    %19 = vector.shape_cast %18 : vector<16xf32> to vector<16x1xf32>
    %cst_15 = arith.constant 2.560000e-06 : f32
    %20 = vector.broadcast %cst_15 : f32 to vector<16x1xf32>
    %21 = arith.maximumf %19, %20 : vector<16x1xf32>
    %22 = tpu.reciprocal %21 {approx = true} : vector<16x1xf32> -> vector<16x1xf32>
    %cst_16 = arith.constant 2.560000e+02 : f32
    %23 = vector.broadcast %cst_16 : f32 to vector<16x1xf32>
    %24 = arith.mulf %22, %23 : vector<16x1xf32>
    %25 = vector.broadcast %24 : vector<16x1xf32> to vector<16x256xf32>
    %26 = arith.mulf %16, %25 : vector<16x256xf32>
    %27 = arith.truncf %26 : vector<16x256xf32> to vector<16x256xbf16>
    %cst_17 = arith.constant dense<0.000000e+00> : vector<16x256xf32>
    %28 = tpu.matmul %27, %5, %cst_17 {dimension_numbers = #tpu.dot_dimension_numbers<[1], [0], [0], [1], [0, 0, 1, 1], [], []>} : vector<16x256xbf16>, vector<256x256xbf16>, vector<16x256xf32> -> vector<16x256xf32>
    %cst_18 = arith.constant dense<0.000000e+00> : vector<16x256xf32>
    %29 = tpu.matmul %3, %6, %cst_18 {dimension_numbers = #tpu.dot_dimension_numbers<[1], [0], [0], [1], [0, 0, 1, 1], [], []>} : vector<16x256xbf16>, vector<256x256xbf16>, vector<16x256xf32> -> vector<16x256xf32>
    %30 = arith.addf %28, %29 : vector<16x256xf32>
    %31 = vector.broadcast %9 : vector<1x256xf32> to vector<16x256xf32>
    %32 = arith.addf %30, %31 : vector<16x256xf32>
    %cst_19 = arith.constant 0.000000e+00 : f32
    %33 = vector.broadcast %cst_19 : f32 to vector<16x256xf32>
    %34 = arith.cmpf ogt, %32, %33 : vector<16x256xf32>
    %cst_20 = arith.constant 0.000000e+00 : f32
    %35 = vector.broadcast %cst_20 : f32 to vector<16x256xf32>
    %36 = arith.minimumf %32, %35 : vector<16x256xf32>
    %37 = math.exp %36 : vector<16x256xf32>
    %cst_21 = arith.constant 1.000000e+00 : f32
    %38 = vector.broadcast %cst_21 : f32 to vector<16x256xf32>
    %39 = arith.subf %37, %38 : vector<16x256xf32>
    %40 = arith.select %34, %32, %39 : vector<16x256xi1>, vector<16x256xf32>
    %41 = arith.truncf %40 : vector<16x256xf32> to vector<16x256xbf16>
    %cst_22 = arith.constant dense<0.000000e+00> : vector<16x256xf32>
    %42 = tpu.matmul %41, %7, %cst_22 {dimension_numbers = #tpu.dot_dimension_numbers<[1], [0], [0], [1], [0, 0, 1, 1], [], []>} : vector<16x256xbf16>, vector<256x256xbf16>, vector<16x256xf32> -> vector<16x256xf32>
    %43 = vector.broadcast %10 : vector<1x256xf32> to vector<16x256xf32>
    %44 = arith.addf %42, %43 : vector<16x256xf32>
    %cst_23 = arith.constant 0.000000e+00 : f32
    %45 = vector.broadcast %cst_23 : f32 to vector<16x256xf32>
    %46 = arith.cmpf ogt, %44, %45 : vector<16x256xf32>
    %cst_24 = arith.constant 0.000000e+00 : f32
    %47 = vector.broadcast %cst_24 : f32 to vector<16x256xf32>
    %48 = arith.minimumf %44, %47 : vector<16x256xf32>
    %49 = math.exp %48 : vector<16x256xf32>
    %cst_25 = arith.constant 1.000000e+00 : f32
    %50 = vector.broadcast %cst_25 : f32 to vector<16x256xf32>
    %51 = arith.subf %49, %50 : vector<16x256xf32>
    %52 = arith.select %46, %44, %51 : vector<16x256xi1>, vector<16x256xf32>
    %53 = arith.truncf %11 : vector<1x256xf32> to vector<1x256xbf16>
    %54 = arith.truncf %52 : vector<16x256xf32> to vector<16x256xbf16>
    %cst_26 = arith.constant dense<0.000000e+00> : vector<1x16xf32>
    %55 = tpu.matmul %53, %54, %cst_26 {dimension_numbers = #tpu.dot_dimension_numbers<[1], [1], [0], [0], [0, 0, 1, 0], [], []>} : vector<1x256xbf16>, vector<16x256xbf16>, vector<1x16xf32> -> vector<1x16xf32>
    %56 = vector.broadcast %13 : vector<1x1xf32> to vector<1x16xf32>
    %57 = arith.addf %55, %56 : vector<1x16xf32>
    %c0_27 = arith.constant 0 : index
    %c0_28 = arith.constant 0 : index
    %c0_29 = arith.constant 0 : index
    %58 = vector.load %arg5[%c0_27, %c0_28, %c0_29] : memref<1x1x16xf32, #tpu.memory_space<vmem>>, vector<1x1x16xf32>
    %59 = vector.shape_cast %58 : vector<1x1x16xf32> to vector<1x16xf32>
    %60 = vector.shape_cast %57 : vector<1x16xf32> to vector<1x1x16xf32>
    tpu.vector_store %arg5[%c0_27, %c0_28, %c0_29], %60 {strides = array<i32>} : memref<1x1x16xf32, #tpu.memory_space<vmem>>, vector<1x1x16xf32>,
    return
  }
  func.func @transform_0(%arg0: i32) -> (i32, i32) {
    %c0_i32 = arith.constant 0 : i32
    %c0_i32_0 = arith.constant 0 : i32
    return %arg0, %c0_i32 : i32, i32
  }
  func.func @transform_1(%arg0: i32) -> (i32, i32) {
    %c0_i32 = arith.constant 0 : i32
    %c0_i32_0 = arith.constant 0 : i32
    return %arg0, %c0_i32 : i32, i32
  }
  func.func @transform_2(%arg0: i32) -> (i32, i32) {
    %c0_i32 = arith.constant 0 : i32
    %c0_i32_0 = arith.constant 0 : i32
    %c0_i32_1 = arith.constant 0 : i32
    return %c0_i32, %c0_i32_0 : i32, i32
  }
  func.func @transform_3(%arg0: i32) -> (i32, i32) {
    %c0_i32 = arith.constant 0 : i32
    %c0_i32_0 = arith.constant 0 : i32
    %c0_i32_1 = arith.constant 0 : i32
    return %c0_i32, %c0_i32_0 : i32, i32
  }
  func.func @transform_4(%arg0: i32) -> (i32, i32, i32) {
    %c0_i32 = arith.constant 0 : i32
    %c0_i32_0 = arith.constant 0 : i32
    %c0_i32_1 = arith.constant 0 : i32
    return %arg0, %c0_i32, %c0_i32_0 : i32, i32, i32
  }
}

</mosaic_0001>

<llo_original>
// kernel: tpu_custom_call.1
$region0: #{tpu_custom_call.1}
  #allocation0 [shape = 'u32[]', space=smem, size = 0x4, offset = 0x4, fixed_abs, tag = 'smem constant byte address 0x4 - core index']
  #allocation1 [shape = 'u32[72,128]{1,0:T(1,128)}', space=vmem, size = 0x9000, scoped, tag = 'internal scratch']
  %s0 = inlined_call_operand.hbm [shape: f32[16,150], index: 0, kind: input, shape index: {}]
  %s1 = inlined_call_operand.hbm [shape: f32[16,256], index: 1, kind: input, shape index: {}]
  %s2 = inlined_call_operand.hbm [shape: bf16[1024,256], index: 2, kind: input, shape index: {}]
  %s3 = inlined_call_operand.hbm [shape: f32[8,256], index: 3, kind: input, shape index: {}]
  %s4 = inlined_call_operand.hbm [shape: f32[1,1,16], index: 4, kind: output, shape index: {}]
  %s5 = sld [smem:[#allocation0]]
  $region42: #{tpu_custom_call.1} parent=0
    _
  %s7 = ssub.s32 1, %s5
  %s8 = scalar_select 0, %s7, %s5
  $region1: #{tpu_custom_call.1} parent=0
    #allocation2 [shape = 'u8[16384]{0}', space=vmem, size = 0x4000, scoped, tag = 'input window, operand 0, single buffered']
    #allocation3 [shape = 's32[1]{0}', space=sflag, size = 0x4, scoped, tag = 'scoped memory for tpu_custom_call.1']
    #allocation4 [shape = 's32[1]{0}', space=sflag, size = 0x4, scoped, tag = 'scoped memory for tpu_custom_call.1']
    #allocation5 [shape = 'u8[16384]{0}', space=vmem, size = 0x4000, scoped, tag = 'input window, operand 1, single buffered']
    #allocation6 [shape = 's32[1]{0}', space=sflag, size = 0x4, scoped, tag = 'scoped memory for tpu_custom_call.1']
    #allocation7 [shape = 'u8[524288]{0}', space=vmem, size = 0x80000, scoped, tag = 'input window, operand 2, single buffered']
    #allocation8 [shape = 'u8[8192]{0}', space=vmem, size = 0x2000, scoped, tag = 'input window, operand 3, single buffered']
    #allocation9 [shape = 's32[1]{0}', space=sflag, size = 0x4, scoped, tag = 'scoped memory for tpu_custom_call.1']
    #allocation10 [shape = 'u8[512]{0}', space=vmem, size = 0x400, scoped, tag = 'output window, operand 0, single buffered']
    %9 = vsyncpa [#allocation3], 0
    %10 = vsyncpa [#allocation6], 0
    %11 = vsyncpa [#allocation9], 0
    %12 = vsyncpa [#allocation4], 0
    // Predicated region
    $region2: #{tpu_custom_call.1} parent=1 // pred_check
      _
    $region3: #{tpu_custom_call.1} parent=1 // pred_check_branch
      %14 = sbr.rel (0) target = $region5
    $region4: #{tpu_custom_call.1} parent=1 // pred_region
      %16 = vsyncadd [#allocation3], 0
      %s17 = sshll.u32 %s0, 4
      %s18 = int_to_ptr.hbm [resolvable:$true] %s17
      %s19 = sshll.u32 [#allocation2], 4
      %s20 = int_to_ptr.vmem [resolvable:$true] %s19
      %25 = dma.hbm_to_vmem [thread:$0]  %s18, 512, %s20, [#allocation3], 256, 256, 16
    $region5: #{tpu_custom_call.1} parent=1 // pred_fallthru
      _
    // Predicated region
    $region6: #{tpu_custom_call.1} parent=1 // pred_check
      _
    $region7: #{tpu_custom_call.1} parent=1 // pred_check_branch
      %27 = sbr.rel (0) target = $region9
    $region8: #{tpu_custom_call.1} parent=1 // pred_region
      %29 = vsyncadd [#allocation6], 0
      %s30 = sshll.u32 %s1, 4
      %s31 = int_to_ptr.hbm [resolvable:$true] %s30
      %s32 = sshll.u32 [#allocation5], 4
      %s33 = int_to_ptr.vmem [resolvable:$true] %s32
      %38 = dma.hbm_to_vmem [thread:$0]  %s31, 512, %s33, [#allocation6], 256, 256, 16
    $region9: #{tpu_custom_call.1} parent=1 // pred_fallthru
      _
    // Predicated region
    $region10: #{tpu_custom_call.1} parent=1 // pred_check
      _
    $region11: #{tpu_custom_call.1} parent=1 // pred_check_branch
      %40 = sbr.rel (0) target = $region13
    $region12: #{tpu_custom_call.1} parent=1 // pred_region
      %42 = vsyncadd [#allocation6], 0
      %s43 = sshll.u32 %s2, 4
      %s44 = int_to_ptr.hbm [resolvable:$true] %s43
      %s45 = sshll.u32 [#allocation7], 4
      %s46 = int_to_ptr.vmem [resolvable:$true] %s45
      %51 = dma.hbm_to_vmem [thread:$0]  %s44, 16384, %s46, [#allocation6], 128, 128, 8
    $region13: #{tpu_custom_call.1} parent=1 // pred_fallthru
      _
    // Predicated region
    $region14: #{tpu_custom_call.1} parent=1 // pred_check
      _
    $region15: #{tpu_custom_call.1} parent=1 // pred_check_branch
      %53 = sbr.rel (0) target = $region17
    $region16: #{tpu_custom_call.1} parent=1 // pred_region
      %55 = vsyncadd [#allocation9], 0
      %s57 = sshll.u32 %s3, 4
      %s58 = int_to_ptr.hbm [resolvable:$true] %s57
      %s59 = sshll.u32 [#allocation8], 4
      %s60 = int_to_ptr.vmem [resolvable:$true] %s59
      %62 = dma.hbm_to_vmem [thread:$0]  %s58, 256, %s60, [#allocation9]
    $region17: #{tpu_custom_call.1} parent=1 // pred_fallthru
      _
    // Predicated region
    $region18: #{tpu_custom_call.1} parent=1 // pred_check
      _
    $region19: #{tpu_custom_call.1} parent=1 // pred_check_branch
      %64 = sbr.rel (0) target = $region21
    $region20: #{tpu_custom_call.1} parent=1 // pred_region
      %66 = dma.done [#allocation3], 512
    $region21: #{tpu_custom_call.1} parent=1 // pred_fallthru
      _
    // Predicated region
    $region22: #{tpu_custom_call.1} parent=1 // pred_check
      _
    $region23: #{tpu_custom_call.1} parent=1 // pred_check_branch
      %68 = sbr.rel (0) target = $region25
    $region24: #{tpu_custom_call.1} parent=1 // pred_region
      %70 = dma.done [#allocation6], 512
    $region25: #{tpu_custom_call.1} parent=1 // pred_fallthru
      _
    // Predicated region
    $region26: #{tpu_custom_call.1} parent=1 // pred_check
      _
    $region27: #{tpu_custom_call.1} parent=1 // pred_check_branch
      %72 = sbr.rel (0) target = $region29
    $region28: #{tpu_custom_call.1} parent=1 // pred_region
      %74 = dma.done [#allocation6], 16384
    $region29: #{tpu_custom_call.1} parent=1 // pred_fallthru
      _
    // Predicated region
    $region30: #{tpu_custom_call.1} parent=1 // pred_check
      _
    $region31: #{tpu_custom_call.1} parent=1 // pred_check_branch
      %76 = sbr.rel (0) target = $region33
    $region32: #{tpu_custom_call.1} parent=1 // pred_region
      %78 = dma.done [#allocation9], 256
    $region33: #{tpu_custom_call.1} parent=1 // pred_fallthru
      _
    %v80 = vld [vmem:[#allocation2] sm:$0xff]
    %v81 = vld [vmem:[#allocation2 + $0x8] sm:$0xff]
    %v82 = vld [vmem:[#allocation2 + $0x10] sm:$0xff]
    %v83 = vld [vmem:[#allocation2 + $0x18] sm:$0xff]
    %v84 = vpack.c.bf16 %v82, %v80
    %v85 = vpack.c.bf16 %v83, %v81
    %v86 = vld [vmem:[#allocation5] sm:$0xff]
    %v87 = vld [vmem:[#allocation5 + $0x8] sm:$0xff]
    %v88 = vld [vmem:[#allocation5 + $0x10] sm:$0xff]
    %v89 = vld [vmem:[#allocation5 + $0x18] sm:$0xff]
    %v90 = vpack.c.bf16 %v88, %v86
    %v91 = vpack.c.bf16 %v89, %v87
    %v92 = vld [vmem:[#allocation7] sm:$0xff]
    %v93 = vld [vmem:[#allocation7 + $0x8] sm:$0xff]
    %v94 = vld [vmem:[#allocation7 + $0x10] sm:$0xff]
    %v95 = vld [vmem:[#allocation7 + $0x18] sm:$0xff]
    %v96 = vld [vmem:[#allocation7 + $0x20] sm:$0xff]
    %v97 = vld [vmem:[#allocation7 + $0x28] sm:$0xff]
    %v98 = vld [vmem:[#allocation7 + $0x30] sm:$0xff]
    %v99 = vld [vmem:[#allocation7 + $0x38] sm:$0xff]
    %v100 = vld [vmem:[#allocation7 + $0x40] sm:$0xff]
    %v101 = vld [vmem:[#allocation7 + $0x48] sm:$0xff]
    %v102 = vld [vmem:[#allocation7 + $0x50] sm:$0xff]
    %v103 = vld [vmem:[#allocation7 + $0x58] sm:$0xff]
    %v104 = vld [vmem:[#allocation7 + $0x60] sm:$0xff]
    %v105 = vld [vmem:[#allocation7 + $0x68] sm:$0xff]
    %v106 = vld [vmem:[#allocation7 + $0x70] sm:$0xff]
    %v107 = vld [vmem:[#allocation7 + $0x78] sm:$0xff]
    %v108 = vld [vmem:[#allocation7 + $0x80] sm:$0xff]
    %v109 = vld [vmem:[#allocation7 + $0x88] sm:$0xff]
    %v110 = vld [vmem:[#allocation7 + $0x90] sm:$0x77]
    %v111 = vld [vmem:[#allocation7 + $0x100] sm:$0xff]
    %v112 = vld [vmem:[#allocation7 + $0x108] sm:$0xff]
    %v113 = vld [vmem:[#allocation7 + $0x110] sm:$0xff]
    %v114 = vld [vmem:[#allocation7 + $0x118] sm:$0xff]
    %v115 = vld [vmem:[#allocation7 + $0x120] sm:$0xff]
    %v116 = vld [vmem:[#allocation7 + $0x128] sm:$0xff]
    %v117 = vld [vmem:[#allocation7 + $0x130] sm:$0xff]
    %v118 = vld [vmem:[#allocation7 + $0x138] sm:$0xff]
    %v119 = vld [vmem:[#allocation7 + $0x140] sm:$0xff]
    %v120 = vld [vmem:[#allocation7 + $0x148] sm:$0xff]
    %v121 = vld [vmem:[#allocation7 + $0x150] sm:$0xff]
    %v122 = vld [vmem:[#allocation7 + $0x158] sm:$0xff]
    %v123 = vld [vmem:[#allocation7 + $0x160] sm:$0xff]
    %v124 = vld [vmem:[#allocation7 + $0x168] sm:$0xff]
    %v125 = vld [vmem:[#allocation7 + $0x170] sm:$0xff]
    %v126 = vld [vmem:[#allocation7 + $0x178] sm:$0xff]
    %v127 = vld [vmem:[#allocation7 + $0x180] sm:$0xff]
    %v128 = vld [vmem:[#allocation7 + $0x188] sm:$0xff]
    %v129 = vld [vmem:[#allocation7 + $0x190] sm:$0xff]
    %v130 = vld [vmem:[#allocation7 + $0x198] sm:$0xff]
    %v131 = vld [vmem:[#allocation7 + $0x1a0] sm:$0xff]
    %v132 = vld [vmem:[#allocation7 + $0x1a8] sm:$0xff]
    %v133 = vld [vmem:[#allocation7 + $0x1b0] sm:$0xff]
    %v134 = vld [vmem:[#allocation7 + $0x1b8] sm:$0xff]
    %v135 = vld [vmem:[#allocation7 + $0x1c0] sm:$0xff]
    %v136 = vld [vmem:[#allocation7 + $0x1c8] sm:$0xff]
    %v137 = vld [vmem:[#allocation7 + $0x1d0] sm:$0xff]
    %v138 = vld [vmem:[#allocation7 + $0x1d8] sm:$0xff]
    %v139 = vld [vmem:[#allocation7 + $0x1e0] sm:$0xff]
    %v140 = vld [vmem:[#allocation7 + $0x1e8] sm:$0xff]
    %v141 = vld [vmem:[#allocation7 + $0x1f0] sm:$0xff]
    %v142 = vld [vmem:[#allocation7 + $0x1f8] sm:$0xff]
    %v143 = vld [vmem:[#allocation7 + $0x200] sm:$0xff]
    %v144 = vld [vmem:[#allocation7 + $0x208] sm:$0xff]
    %v145 = vld [vmem:[#allocation7 + $0x210] sm:$0xff]
    %v146 = vld [vmem:[#allocation7 + $0x218] sm:$0xff]
    %v147 = vld [vmem:[#allocation7 + $0x220] sm:$0xff]
    %v148 = vld [vmem:[#allocation7 + $0x228] sm:$0xff]
    %v149 = vld [vmem:[#allocation7 + $0x230] sm:$0xff]
    %v150 = vld [vmem:[#allocation7 + $0x238] sm:$0xff]
    %v151 = vld [vmem:[#allocation7 + $0x240] sm:$0xff]
    %v152 = vld [vmem:[#allocation7 + $0x248] sm:$0xff]
    %v153 = vld [vmem:[#allocation7 + $0x250] sm:$0xff]
    %v154 = vld [vmem:[#allocation7 + $0x258] sm:$0xff]
    %v155 = vld [vmem:[#allocation7 + $0x260] sm:$0xff]
    %v156 = vld [vmem:[#allocation7 + $0x268] sm:$0xff]
    %v157 = vld [vmem:[#allocation7 + $0x270] sm:$0xff]
    %v158 = vld [vmem:[#allocation7 + $0x278] sm:$0xff]
    %v159 = vld [vmem:[#allocation7 + $0x280] sm:$0xff]
    %v160 = vld [vmem:[#allocation7 + $0x288] sm:$0xff]
    %v161 = vld [vmem:[#allocation7 + $0x290] sm:$0xff]
    %v162 = vld [vmem:[#allocation7 + $0x298] sm:$0xff]
    %v163 = vld [vmem:[#allocation7 + $0x2a0] sm:$0xff]
    %v164 = vld [vmem:[#allocation7 + $0x2a8] sm:$0xff]
    %v165 = vld [vmem:[#allocation7 + $0x2b0] sm:$0xff]
    %v166 = vld [vmem:[#allocation7 + $0x2b8] sm:$0xff]
    %v167 = vld [vmem:[#allocation7 + $0x2c0] sm:$0xff]
    %v168 = vld [vmem:[#allocation7 + $0x2c8] sm:$0xff]
    %v169 = vld [vmem:[#allocation7 + $0x2d0] sm:$0xff]
    %v170 = vld [vmem:[#allocation7 + $0x2d8] sm:$0xff]
    %v171 = vld [vmem:[#allocation7 + $0x2e0] sm:$0xff]
    %v172 = vld [vmem:[#allocation7 + $0x2e8] sm:$0xff]
    %v173 = vld [vmem:[#allocation7 + $0x2f0] sm:$0xff]
    %v174 = vld [vmem:[#allocation7 + $0x2f8] sm:$0xff]
    %v175 = vld [vmem:[#allocation7 + $0x300] sm:$0xff]
    %v176 = vld [vmem:[#allocation7 + $0x308] sm:$0xff]
    %v177 = vld [vmem:[#allocation7 + $0x310] sm:$0xff]
    %v178 = vld [vmem:[#allocation7 + $0x318] sm:$0xff]
    %v179 = vld [vmem:[#allocation7 + $0x320] sm:$0xff]
    %v180 = vld [vmem:[#allocation7 + $0x328] sm:$0xff]
    %v181 = vld [vmem:[#allocation7 + $0x330] sm:$0xff]
    %v182 = vld [vmem:[#allocation7 + $0x338] sm:$0xff]
    %v183 = vld [vmem:[#allocation7 + $0x340] sm:$0xff]
    %v184 = vld [vmem:[#allocation7 + $0x348] sm:$0xff]
    %v185 = vld [vmem:[#allocation7 + $0x350] sm:$0xff]
    %v186 = vld [vmem:[#allocation7 + $0x358] sm:$0xff]
    %v187 = vld [vmem:[#allocation7 + $0x360] sm:$0xff]
    %v188 = vld [vmem:[#allocation7 + $0x368] sm:$0xff]
    %v189 = vld [vmem:[#allocation7 + $0x370] sm:$0xff]
    %v190 = vld [vmem:[#allocation7 + $0x378] sm:$0xff]
    %v191 = vld [vmem:[#allocation7 + $0x380] sm:$0xff]
    %v192 = vld [vmem:[#allocation7 + $0x388] sm:$0xff]
    %v193 = vld [vmem:[#allocation7 + $0x390] sm:$0xff]
    %v194 = vld [vmem:[#allocation7 + $0x398] sm:$0xff]
    %v195 = vld [vmem:[#allocation7 + $0x3a0] sm:$0xff]
    %v196 = vld [vmem:[#allocation7 + $0x3a8] sm:$0xff]
    %v197 = vld [vmem:[#allocation7 + $0x3b0] sm:$0xff]
    %v198 = vld [vmem:[#allocation7 + $0x3b8] sm:$0xff]
    %v199 = vld [vmem:[#allocation7 + $0x3c0] sm:$0xff]
    %v200 = vld [vmem:[#allocation7 + $0x3c8] sm:$0xff]
    %v201 = vld [vmem:[#allocation7 + $0x3d0] sm:$0xff]
    %v202 = vld [vmem:[#allocation7 + $0x3d8] sm:$0xff]
    %v203 = vld [vmem:[#allocation7 + $0x3e0] sm:$0xff]
    %v204 = vld [vmem:[#allocation7 + $0x3e8] sm:$0xff]
    %v205 = vld [vmem:[#allocation7 + $0x3f0] sm:$0xff]
    %v206 = vld [vmem:[#allocation7 + $0x3f8] sm:$0xff]
    %v207 = vld [vmem:[#allocation8] ss:$8 sm:$0x3]
    %s208 = scalar_lea.vmem [#allocation8], 1
    %v209 = vld [vmem:[%s208] ss:$8 sm:$0x3]
    %s210 = scalar_lea.vmem [#allocation8], 2
    %v211 = vld [vmem:[%s210] ss:$8 sm:$0x3]
    %s212 = scalar_lea.vmem [#allocation8], 3
    %v213 = vld [vmem:[%s212] ss:$8 sm:$0x3]
    %s214 = scalar_lea.vmem [#allocation8], 4
    %v215 = vld [vmem:[%s214] ss:$8 sm:$0x3]
    %v217 = vperm.slane %v207, 0
    %v218 = vperm.slane %v207, 1
    %v240 = vunpack.c.l.b16 %v92
    %v241 = vunpack.c.h.b16 %v92
    %v242 = vunpack.c.l.b16 %v93
    %v243 = vunpack.c.h.b16 %v93
    %v244 = vunpack.c.l.b16 %v94
    %v245 = vunpack.c.h.b16 %v94
    %v246 = vunpack.c.l.b16 %v95
    %v247 = vunpack.c.h.b16 %v95
    %v248 = vunpack.c.l.b16 %v96
    %v249 = vunpack.c.h.b16 %v96
    %v250 = vunpack.c.l.b16 %v97
    %v251 = vunpack.c.h.b16 %v97
    %v252 = vunpack.c.l.b16 %v98
    %v253 = vunpack.c.h.b16 %v98
    %v254 = vunpack.c.l.b16 %v99
    %v255 = vunpack.c.h.b16 %v99
    %v256 = vunpack.c.l.b16 %v100
    %v257 = vunpack.c.h.b16 %v100
    %v258 = vunpack.c.l.b16 %v101
    %v259 = vunpack.c.h.b16 %v101
    %v260 = vunpack.c.l.b16 %v102
    %v261 = vunpack.c.h.b16 %v102
    %v262 = vunpack.c.l.b16 %v103
    %v263 = vunpack.c.h.b16 %v103
    %v264 = vunpack.c.l.b16 %v104
    %v265 = vunpack.c.h.b16 %v104
    %v266 = vunpack.c.l.b16 %v105
    %v267 = vunpack.c.h.b16 %v105
    %v268 = vunpack.c.l.b16 %v106
    %v269 = vunpack.c.h.b16 %v106
    %v270 = vunpack.c.l.b16 %v107
    %v271 = vunpack.c.h.b16 %v107
    %v272 = vunpack.c.l.b16 %v108
    %v273 = vunpack.c.h.b16 %v108
    %v274 = vunpack.c.l.b16 %v109
    %v275 = vunpack.c.h.b16 %v109
    %v276 = vunpack.c.l.b16 %v110
    %v277 = vunpack.c.h.b16 %v110
    %v278 = vpack.c.b16 %v242, %v240
    %v279 = vpack.c.b16 %v243, %v241
    %v280 = vpack.c.b16 %v246, %v244
    %v281 = vpack.c.b16 %v247, %v245
    %v282 = vpack.c.b16 %v250, %v248
    %v283 = vpack.c.b16 %v251, %v249
    %v284 = vpack.c.b16 %v254, %v252
    %v285 = vpack.c.b16 %v255, %v253
    %v286 = vpack.c.b16 %v258, %v256
    %v287 = vpack.c.b16 %v259, %v257
    %v288 = vpack.c.b16 %v262, %v260
    %v289 = vpack.c.b16 %v263, %v261
    %v290 = vpack.c.b16 %v266, %v264
    %v291 = vpack.c.b16 %v267, %v265
    %v292 = vpack.c.b16 %v270, %v268
    %v293 = vpack.c.b16 %v271, %v269
    %v294 = vpack.c.b16 %v274, %v272
    %v295 = vpack.c.b16 %v275, %v273
    %v296 = vpack.c.b16 %v276, %v276
    %v297 = vpack.c.b16 %v277, %v277
    %vm316 = vcmask 179200
    %v318 = vsel %vm316, %v85, 0
    %vm320 = vcmask 1042432
    %v322 = vsel %vm320, %v296, 0
    %v325 = vsel %vm320, %v297, 0
    %327 = vmatpush.bf16.msra.mxu0 %v292
    %328 = vmatpush.bf16.msra.mxu0 %v290
    %329 = vmatpush.bf16.msra.mxu0 %v288
    %330 = vmatpush.bf16.msra.mxu0 %v286
    %331 = vmatpush.bf16.msra.mxu0 %v284
    %332 = vmatpush.bf16.msra.mxu0 %v282
    %333 = vmatpush.bf16.msra.mxu0 %v280
    %334 = vmatpush.bf16.msra.mxu0 %v278
    %335 = vmatmul.bf16.gmra.mxu0 %v84
    %v336 = vpop.f32.mrf.mxu0
    %v337 = vadd.f32 %v217, %v336
    %v338 = vpop.f32.mrf.mxu0
    %v339 = vadd.f32 %v217, %v338
    %340 = vdwg.mxu0
    %341 = vmatpush.bf16.msra.mxu0 0
    %342 = vmatpush.bf16.msra.mxu0 0
    %343 = vmatpush.bf16.msra.mxu0 0
    %344 = vmatpush.bf16.msra.mxu0 0
    %345 = vmatpush.bf16.msra.mxu0 0
    %346 = vmatpush.bf16.msra.mxu0 0
    %347 = vmatpush.bf16.msra.mxu0 %v322
    %348 = vmatpush.bf16.msra.mxu0 %v294
    %349 = vmatmul.bf16.gmra.mxu0 %v318
    %v350 = vpop.f32.mrf.mxu0
    %v351 = vadd.f32 %v337, %v350
    %v352 = vpop.f32.mrf.mxu0
    %v353 = vadd.f32 %v339, %v352
    %354 = vdwg.mxu0
    %355 = vmatpush.bf16.msra.mxu0 %v293
    %356 = vmatpush.bf16.msra.mxu0 %v291
    %357 = vmatpush.bf16.msra.mxu0 %v289
    %358 = vmatpush.bf16.msra.mxu0 %v287
    %359 = vmatpush.bf16.msra.mxu0 %v285
    %360 = vmatpush.bf16.msra.mxu0 %v283
    %361 = vmatpush.bf16.msra.mxu0 %v281
    %362 = vmatpush.bf16.msra.mxu0 %v279
    %363 = vmatmul.bf16.gmra.mxu0 %v84
    %v364 = vpop.f32.mrf.mxu0
    %v365 = vadd.f32 %v218, %v364
    %v366 = vpop.f32.mrf.mxu0
    %v367 = vadd.f32 %v218, %v366
    %368 = vdwg.mxu0
    %369 = vmatpush.bf16.msra.mxu0 0
    %370 = vmatpush.bf16.msra.mxu0 0
    %371 = vmatpush.bf16.msra.mxu0 0
    %372 = vmatpush.bf16.msra.mxu0 0
    %373 = vmatpush.bf16.msra.mxu0 0
    %374 = vmatpush.bf16.msra.mxu0 0
    %375 = vmatpush.bf16.msra.mxu0 %v325
    %376 = vmatpush.bf16.msra.mxu0 %v295
    %377 = vmatmul.bf16.gmra.mxu0 %v318
    %v378 = vpop.f32.mrf.mxu0
    %v379 = vadd.f32 %v365, %v378
    %v380 = vpop.f32.mrf.mxu0
    %v381 = vadd.f32 %v367, %v380
    %382 = vdwg.mxu0
    %v383 = vand.u32 2147483647, %v351
    %v384 = vand.u32 2147483647, %v379
    %v385 = vand.u32 2147483647, %v353
    %v386 = vand.u32 2147483647, %v381
    %v387 = vadd.f32 %v383, %v384
    %388 = vadd.xlane.f32.xlu0 %v387
    %v389 = vpop.xlane.xlu0 %388
    %v390 = vadd.f32 %v385, %v386
    %391 = vadd.xlane.f32.xlu0 %v390
    %v392 = vpop.xlane.xlu0 %391
    %v393 = vmax.f32 %v389, 2.56e-06
    %v394 = vmax.f32 %v392, 2.56e-06
    %v395 = vrcp.pop %v393
    %v396 = vrcp.pop %v394
    %v397 = vmul.f32 %v395, 256.0
    %v398 = vmul.f32 %v396, 256.0
    %v399 = vmul.f32 %v351, %v397
    %v400 = vmul.f32 %v379, %v397
    %v401 = vmul.f32 %v353, %v398
    %v402 = vmul.f32 %v381, %v398
    %v403 = vpack.c.bf16 %v401, %v399
    %v404 = vpack.c.bf16 %v402, %v400
    %v437 = vunpack.c.l.b16 %v143
    %v438 = vunpack.c.h.b16 %v143
    %v439 = vunpack.c.l.b16 %v144
    %v440 = vunpack.c.h.b16 %v144
    %v441 = vunpack.c.l.b16 %v145
    %v442 = vunpack.c.h.b16 %v145
    %v443 = vunpack.c.l.b16 %v146
    %v444 = vunpack.c.h.b16 %v146
    %v445 = vunpack.c.l.b16 %v147
    %v446 = vunpack.c.h.b16 %v147
    %v447 = vunpack.c.l.b16 %v148
    %v448 = vunpack.c.h.b16 %v148
    %v449 = vunpack.c.l.b16 %v149
    %v450 = vunpack.c.h.b16 %v149
    %v451 = vunpack.c.l.b16 %v150
    %v452 = vunpack.c.h.b16 %v150
    %v453 = vunpack.c.l.b16 %v151
    %v454 = vunpack.c.h.b16 %v151
    %v455 = vunpack.c.l.b16 %v152
    %v456 = vunpack.c.h.b16 %v152
    %v457 = vunpack.c.l.b16 %v153
    %v458 = vunpack.c.h.b16 %v153
    %v459 = vunpack.c.l.b16 %v154
    %v460 = vunpack.c.h.b16 %v154
    %v461 = vunpack.c.l.b16 %v155
    %v462 = vunpack.c.h.b16 %v155
    %v463 = vunpack.c.l.b16 %v156
    %v464 = vunpack.c.h.b16 %v156
    %v465 = vunpack.c.l.b16 %v157
    %v466 = vunpack.c.h.b16 %v157
    %v467 = vunpack.c.l.b16 %v158
    %v468 = vunpack.c.h.b16 %v158
    %v469 = vunpack.c.l.b16 %v159
    %v470 = vunpack.c.h.b16 %v159
    %v471 = vunpack.c.l.b16 %v160
    %v472 = vunpack.c.h.b16 %v160
    %v473 = vunpack.c.l.b16 %v161
    %v474 = vunpack.c.h.b16 %v161
    %v475 = vunpack.c.l.b16 %v162
    %v476 = vunpack.c.h.b16 %v162
    %v477 = vunpack.c.l.b16 %v163
    %v478 = vunpack.c.h.b16 %v163
    %v479 = vunpack.c.l.b16 %v164
    %v480 = vunpack.c.h.b16 %v164
    %v481 = vunpack.c.l.b16 %v165
    %v482 = vunpack.c.h.b16 %v165
    %v483 = vunpack.c.l.b16 %v166
    %v484 = vunpack.c.h.b16 %v166
    %v485 = vunpack.c.l.b16 %v167
    %v486 = vunpack.c.h.b16 %v167
    %v487 = vunpack.c.l.b16 %v168
    %v488 = vunpack.c.h.b16 %v168
    %v489 = vunpack.c.l.b16 %v169
    %v490 = vunpack.c.h.b16 %v169
    %v491 = vunpack.c.l.b16 %v170
    %v492 = vunpack.c.h.b16 %v170
    %v493 = vunpack.c.l.b16 %v171
    %v494 = vunpack.c.h.b16 %v171
    %v495 = vunpack.c.l.b16 %v172
    %v496 = vunpack.c.h.b16 %v172
    %v497 = vunpack.c.l.b16 %v173
    %v498 = vunpack.c.h.b16 %v173
    %v499 = vunpack.c.l.b16 %v174
    %v500 = vunpack.c.h.b16 %v174
    %v501 = vpack.c.b16 %v439, %v437
    %v502 = vpack.c.b16 %v440, %v438
    %v503 = vpack.c.b16 %v443, %v441
    %v504 = vpack.c.b16 %v444, %v442
    %v505 = vpack.c.b16 %v447, %v445
    %v506 = vpack.c.b16 %v448, %v446
    %v507 = vpack.c.b16 %v451, %v449
    %v508 = vpack.c.b16 %v452, %v450
    %v509 = vpack.c.b16 %v455, %v453
    %v510 = vpack.c.b16 %v456, %v454
    %v511 = vpack.c.b16 %v459, %v457
    %v512 = vpack.c.b16 %v460, %v458
    %v513 = vpack.c.b16 %v463, %v461
    %v514 = vpack.c.b16 %v464, %v462
    %v515 = vpack.c.b16 %v467, %v465
    %v516 = vpack.c.b16 %v468, %v466
    %v517 = vpack.c.b16 %v471, %v469
    %v518 = vpack.c.b16 %v472, %v470
    %v519 = vpack.c.b16 %v475, %v473
    %v520 = vpack.c.b16 %v476, %v474
    %v521 = vpack.c.b16 %v479, %v477
    %v522 = vpack.c.b16 %v480, %v478
    %v523 = vpack.c.b16 %v483, %v481
    %v524 = vpack.c.b16 %v484, %v482
    %v525 = vpack.c.b16 %v487, %v485
    %v526 = vpack.c.b16 %v488, %v486
    %v527 = vpack.c.b16 %v491, %v489
    %v528 = vpack.c.b16 %v492, %v490
    %v529 = vpack.c.b16 %v495, %v493
    %v530 = vpack.c.b16 %v496, %v494
    %v531 = vpack.c.b16 %v499, %v497
    %v532 = vpack.c.b16 %v500, %v498
    %565 = vmatpush.bf16.msra.mxu0 %v515
    %566 = vmatpush.bf16.msra.mxu0 %v513
    %567 = vmatpush.bf16.msra.mxu0 %v511
    %568 = vmatpush.bf16.msra.mxu0 %v509
    %569 = vmatpush.bf16.msra.mxu0 %v507
    %570 = vmatpush.bf16.msra.mxu0 %v505
    %571 = vmatpush.bf16.msra.mxu0 %v503
    %572 = vmatpush.bf16.msra.mxu0 %v501
    %573 = vmatmul.bf16.gmra.mxu0 %v90
    %v574 = vpop.f32.mrf.mxu0
    %v575 = vadd.f32 0.0, %v574
    %v576 = vpop.f32.mrf.mxu0
    %v577 = vadd.f32 0.0, %v576
    %578 = vdwg.mxu0
    %579 = vmatpush.bf16.msra.mxu0 %v531
    %580 = vmatpush.bf16.msra.mxu0 %v529
    %581 = vmatpush.bf16.msra.mxu0 %v527
    %582 = vmatpush.bf16.msra.mxu0 %v525
    %583 = vmatpush.bf16.msra.mxu0 %v523
    %584 = vmatpush.bf16.msra.mxu0 %v521
    %585 = vmatpush.bf16.msra.mxu0 %v519
    %586 = vmatpush.bf16.msra.mxu0 %v517
    %587 = vmatmul.bf16.gmra.mxu0 %v91
    %v588 = vpop.f32.mrf.mxu0
    %v589 = vadd.f32 %v575, %v588
    %v590 = vpop.f32.mrf.mxu0
    %v591 = vadd.f32 %v577, %v590
    %592 = vdwg.mxu0
    %593 = vmatpush.bf16.msra.mxu0 %v516
    %594 = vmatpush.bf16.msra.mxu0 %v514
    %595 = vmatpush.bf16.msra.mxu0 %v512
    %596 = vmatpush.bf16.msra.mxu0 %v510
    %597 = vmatpush.bf16.msra.mxu0 %v508
    %598 = vmatpush.bf16.msra.mxu0 %v506
    %599 = vmatpush.bf16.msra.mxu0 %v504
    %600 = vmatpush.bf16.msra.mxu0 %v502
    %601 = vmatmul.bf16.gmra.mxu0 %v90
    %v602 = vpop.f32.mrf.mxu0
    %v603 = vadd.f32 0.0, %v602
    %v604 = vpop.f32.mrf.mxu0
    %v605 = vadd.f32 0.0, %v604
    %606 = vdwg.mxu0
    %607 = vmatpush.bf16.msra.mxu0 %v532
    %608 = vmatpush.bf16.msra.mxu0 %v530
    %609 = vmatpush.bf16.msra.mxu0 %v528
    %610 = vmatpush.bf16.msra.mxu0 %v526
    %611 = vmatpush.bf16.msra.mxu0 %v524
    %612 = vmatpush.bf16.msra.mxu0 %v522
    %613 = vmatpush.bf16.msra.mxu0 %v520
    %614 = vmatpush.bf16.msra.mxu0 %v518
    %615 = vmatmul.bf16.gmra.mxu0 %v91
    %v616 = vpop.f32.mrf.mxu0
    %v617 = vadd.f32 %v603, %v616
    %v618 = vpop.f32.mrf.mxu0
    %v619 = vadd.f32 %v605, %v618
    %620 = vdwg.mxu0
    %v653 = vunpack.c.l.b16 %v111
    %v654 = vunpack.c.h.b16 %v111
    %v655 = vunpack.c.l.b16 %v112
    %v656 = vunpack.c.h.b16 %v112
    %v657 = vunpack.c.l.b16 %v113
    %v658 = vunpack.c.h.b16 %v113
    %v659 = vunpack.c.l.b16 %v114
    %v660 = vunpack.c.h.b16 %v114
    %v661 = vunpack.c.l.b16 %v115
    %v662 = vunpack.c.h.b16 %v115
    %v663 = vunpack.c.l.b16 %v116
    %v664 = vunpack.c.h.b16 %v116
    %v665 = vunpack.c.l.b16 %v117
    %v666 = vunpack.c.h.b16 %v117
    %v667 = vunpack.c.l.b16 %v118
    %v668 = vunpack.c.h.b16 %v118
    %v669 = vunpack.c.l.b16 %v119
    %v670 = vunpack.c.h.b16 %v119
    %v671 = vunpack.c.l.b16 %v120
    %v672 = vunpack.c.h.b16 %v120
    %v673 = vunpack.c.l.b16 %v121
    %v674 = vunpack.c.h.b16 %v121
    %v675 = vunpack.c.l.b16 %v122
    %v676 = vunpack.c.h.b16 %v122
    %v677 = vunpack.c.l.b16 %v123
    %v678 = vunpack.c.h.b16 %v123
    %v679 = vunpack.c.l.b16 %v124
    %v680 = vunpack.c.h.b16 %v124
    %v681 = vunpack.c.l.b16 %v125
    %v682 = vunpack.c.h.b16 %v125
    %v683 = vunpack.c.l.b16 %v126
    %v684 = vunpack.c.h.b16 %v126
    %v685 = vunpack.c.l.b16 %v127
    %v686 = vunpack.c.h.b16 %v127
    %v687 = vunpack.c.l.b16 %v128
    %v688 = vunpack.c.h.b16 %v128
    %v689 = vunpack.c.l.b16 %v129
    %v690 = vunpack.c.h.b16 %v129
    %v691 = vunpack.c.l.b16 %v130
    %v692 = vunpack.c.h.b16 %v130
    %v693 = vunpack.c.l.b16 %v131
    %v694 = vunpack.c.h.b16 %v131
    %v695 = vunpack.c.l.b16 %v132
    %v696 = vunpack.c.h.b16 %v132
    %v697 = vunpack.c.l.b16 %v133
    %v698 = vunpack.c.h.b16 %v133
    %v699 = vunpack.c.l.b16 %v134
    %v700 = vunpack.c.h.b16 %v134
    %v701 = vunpack.c.l.b16 %v135
    %v702 = vunpack.c.h.b16 %v135
    %v703 = vunpack.c.l.b16 %v136
    %v704 = vunpack.c.h.b16 %v136
    %v705 = vunpack.c.l.b16 %v137
    %v706 = vunpack.c.h.b16 %v137
    %v707 = vunpack.c.l.b16 %v138
    %v708 = vunpack.c.h.b16 %v138
    %v709 = vunpack.c.l.b16 %v139
    %v710 = vunpack.c.h.b16 %v139
    %v711 = vunpack.c.l.b16 %v140
    %v712 = vunpack.c.h.b16 %v140
    %v713 = vunpack.c.l.b16 %v141
    %v714 = vunpack.c.h.b16 %v141
    %v715 = vunpack.c.l.b16 %v142
    %v716 = vunpack.c.h.b16 %v142
    %v717 = vpack.c.b16 %v655, %v653
    %v718 = vpack.c.b16 %v656, %v654
    %v719 = vpack.c.b16 %v659, %v657
    %v720 = vpack.c.b16 %v660, %v658
    %v721 = vpack.c.b16 %v663, %v661
    %v722 = vpack.c.b16 %v664, %v662
    %v723 = vpack.c.b16 %v667, %v665
    %v724 = vpack.c.b16 %v668, %v666
    %v725 = vpack.c.b16 %v671, %v669
    %v726 = vpack.c.b16 %v672, %v670
    %v727 = vpack.c.b16 %v675, %v673
    %v728 = vpack.c.b16 %v676, %v674
    %v729 = vpack.c.b16 %v679, %v677
    %v730 = vpack.c.b16 %v680, %v678
    %v731 = vpack.c.b16 %v683, %v681
    %v732 = vpack.c.b16 %v684, %v682
    %v733 = vpack.c.b16 %v687, %v685
    %v734 = vpack.c.b16 %v688, %v686
    %v735 = vpack.c.b16 %v691, %v689
    %v736 = vpack.c.b16 %v692, %v690
    %v737 = vpack.c.b16 %v695, %v693
    %v738 = vpack.c.b16 %v696, %v694
    %v739 = vpack.c.b16 %v699, %v697
    %v740 = vpack.c.b16 %v700, %v698
    %v741 = vpack.c.b16 %v703, %v701
    %v742 = vpack.c.b16 %v704, %v702
    %v743 = vpack.c.b16 %v707, %v705
    %v744 = vpack.c.b16 %v708, %v706
    %v745 = vpack.c.b16 %v711, %v709
    %v746 = vpack.c.b16 %v712, %v710
    %v747 = vpack.c.b16 %v715, %v713
    %v748 = vpack.c.b16 %v716, %v714
    %781 = vmatpush.bf16.msra.mxu0 %v731
    %782 = vmatpush.bf16.msra.mxu0 %v729
    %783 = vmatpush.bf16.msra.mxu0 %v727
    %784 = vmatpush.bf16.msra.mxu0 %v725
    %785 = vmatpush.bf16.msra.mxu0 %v723
    %786 = vmatpush.bf16.msra.mxu0 %v721
    %787 = vmatpush.bf16.msra.mxu0 %v719
    %788 = vmatpush.bf16.msra.mxu0 %v717
    %789 = vmatmul.bf16.gmra.mxu0 %v403
    %v790 = vpop.f32.mrf.mxu0
    %v791 = vadd.f32 %v589, %v790
    %v792 = vpop.f32.mrf.mxu0
    %v793 = vadd.f32 %v591, %v792
    %794 = vdwg.mxu0
    %795 = vmatpush.bf16.msra.mxu0 %v747
    %796 = vmatpush.bf16.msra.mxu0 %v745
    %797 = vmatpush.bf16.msra.mxu0 %v743
    %798 = vmatpush.bf16.msra.mxu0 %v741
    %799 = vmatpush.bf16.msra.mxu0 %v739
    %800 = vmatpush.bf16.msra.mxu0 %v737
    %801 = vmatpush.bf16.msra.mxu0 %v735
    %802 = vmatpush.bf16.msra.mxu0 %v733
    %803 = vmatmul.bf16.gmra.mxu0 %v404
    %v804 = vpop.f32.mrf.mxu0
    %v805 = vadd.f32 %v791, %v804
    %v806 = vpop.f32.mrf.mxu0
    %v807 = vadd.f32 %v793, %v806
    %808 = vdwg.mxu0
    %809 = vmatpush.bf16.msra.mxu0 %v732
    %810 = vmatpush.bf16.msra.mxu0 %v730
    %811 = vmatpush.bf16.msra.mxu0 %v728
    %812 = vmatpush.bf16.msra.mxu0 %v726
    %813 = vmatpush.bf16.msra.mxu0 %v724
    %814 = vmatpush.bf16.msra.mxu0 %v722
    %815 = vmatpush.bf16.msra.mxu0 %v720
    %816 = vmatpush.bf16.msra.mxu0 %v718
    %817 = vmatmul.bf16.gmra.mxu0 %v403
    %v818 = vpop.f32.mrf.mxu0
    %v819 = vadd.f32 %v617, %v818
    %v820 = vpop.f32.mrf.mxu0
    %v821 = vadd.f32 %v619, %v820
    %822 = vdwg.mxu0
    %823 = vmatpush.bf16.msra.mxu0 %v748
    %824 = vmatpush.bf16.msra.mxu0 %v746
    %825 = vmatpush.bf16.msra.mxu0 %v744
    %826 = vmatpush.bf16.msra.mxu0 %v742
    %827 = vmatpush.bf16.msra.mxu0 %v740
    %828 = vmatpush.bf16.msra.mxu0 %v738
    %829 = vmatpush.bf16.msra.mxu0 %v736
    %830 = vmatpush.bf16.msra.mxu0 %v734
    %831 = vmatmul.bf16.gmra.mxu0 %v404
    %v832 = vpop.f32.mrf.mxu0
    %v833 = vadd.f32 %v819, %v832
    %v834 = vpop.f32.mrf.mxu0
    %v835 = vadd.f32 %v821, %v834
    %836 = vdwg.mxu0
    %v838 = vperm.slane %v209, 0
    %v839 = vperm.slane %v209, 1
    %v842 = vadd.f32 %v805, %v838
    %v843 = vadd.f32 %v833, %v839
    %v844 = vadd.f32 %v807, %v838
    %v845 = vadd.f32 %v835, %v839
    %vm846 = vcmp.gt.f32.partialorder %v842, 0.0
    %vm847 = vcmp.gt.f32.partialorder %v843, 0.0
    %vm848 = vcmp.gt.f32.partialorder %v844, 0.0
    %vm849 = vcmp.gt.f32.partialorder %v845, 0.0
    %v850 = vmin.f32 %v842, 0.0
    %v851 = vmin.f32 %v843, 0.0
    %v852 = vmin.f32 %v844, 0.0
    %v853 = vmin.f32 %v845, 0.0
    %v854 = vmul.f32 %v850, 1.442695
    %v855 = vpow.pop %v854
    %v856 = vmul.f32 %v851, 1.442695
    %v857 = vpow.pop %v856
    %v858 = vmul.f32 %v852, 1.442695
    %v859 = vpow.pop %v858
    %v860 = vmul.f32 %v853, 1.442695
    %v861 = vpow.pop %v860
    %v862 = vsub.f32 %v855, 1.0
    %v863 = vsub.f32 %v857, 1.0
    %v864 = vsub.f32 %v859, 1.0
    %v865 = vsub.f32 %v861, 1.0
    %v866 = vsel %vm846, %v842, %v862
    %v867 = vsel %vm847, %v843, %v863
    %v868 = vsel %vm848, %v844, %v864
    %v869 = vsel %vm849, %v845, %v865
    %v870 = vpack.c.bf16 %v868, %v866
    %v871 = vpack.c.bf16 %v869, %v867
    %v873 = vperm.slane %v211, 0
    %v874 = vperm.slane %v211, 1
    %v909 = vunpack.c.l.b16 %v175
    %v910 = vunpack.c.h.b16 %v175
    %v911 = vunpack.c.l.b16 %v176
    %v912 = vunpack.c.h.b16 %v176
    %v913 = vunpack.c.l.b16 %v177
    %v914 = vunpack.c.h.b16 %v177
    %v915 = vunpack.c.l.b16 %v178
    %v916 = vunpack.c.h.b16 %v178
    %v917 = vunpack.c.l.b16 %v179
    %v918 = vunpack.c.h.b16 %v179
    %v919 = vunpack.c.l.b16 %v180
    %v920 = vunpack.c.h.b16 %v180
    %v921 = vunpack.c.l.b16 %v181
    %v922 = vunpack.c.h.b16 %v181
    %v923 = vunpack.c.l.b16 %v182
    %v924 = vunpack.c.h.b16 %v182
    %v925 = vunpack.c.l.b16 %v183
    %v926 = vunpack.c.h.b16 %v183
    %v927 = vunpack.c.l.b16 %v184
    %v928 = vunpack.c.h.b16 %v184
    %v929 = vunpack.c.l.b16 %v185
    %v930 = vunpack.c.h.b16 %v185
    %v931 = vunpack.c.l.b16 %v186
    %v932 = vunpack.c.h.b16 %v186
    %v933 = vunpack.c.l.b16 %v187
    %v934 = vunpack.c.h.b16 %v187
    %v935 = vunpack.c.l.b16 %v188
    %v936 = vunpack.c.h.b16 %v188
    %v937 = vunpack.c.l.b16 %v189
    %v938 = vunpack.c.h.b16 %v189
    %v939 = vunpack.c.l.b16 %v190
    %v940 = vunpack.c.h.b16 %v190
    %v941 = vunpack.c.l.b16 %v191
    %v942 = vunpack.c.h.b16 %v191
    %v943 = vunpack.c.l.b16 %v192
    %v944 = vunpack.c.h.b16 %v192
    %v945 = vunpack.c.l.b16 %v193
    %v946 = vunpack.c.h.b16 %v193
    %v947 = vunpack.c.l.b16 %v194
    %v948 = vunpack.c.h.b16 %v194
    %v949 = vunpack.c.l.b16 %v195
    %v950 = vunpack.c.h.b16 %v195
    %v951 = vunpack.c.l.b16 %v196
    %v952 = vunpack.c.h.b16 %v196
    %v953 = vunpack.c.l.b16 %v197
    %v954 = vunpack.c.h.b16 %v197
    %v955 = vunpack.c.l.b16 %v198
    %v956 = vunpack.c.h.b16 %v198
    %v957 = vunpack.c.l.b16 %v199
    %v958 = vunpack.c.h.b16 %v199
    %v959 = vunpack.c.l.b16 %v200
    %v960 = vunpack.c.h.b16 %v200
    %v961 = vunpack.c.l.b16 %v201
    %v962 = vunpack.c.h.b16 %v201
    %v963 = vunpack.c.l.b16 %v202
    %v964 = vunpack.c.h.b16 %v202
    %v965 = vunpack.c.l.b16 %v203
    %v966 = vunpack.c.h.b16 %v203
    %v967 = vunpack.c.l.b16 %v204
    %v968 = vunpack.c.h.b16 %v204
    %v969 = vunpack.c.l.b16 %v205
    %v970 = vunpack.c.h.b16 %v205
    %v971 = vunpack.c.l.b16 %v206
    %v972 = vunpack.c.h.b16 %v206
    %v973 = vpack.c.b16 %v911, %v909
    %v974 = vpack.c.b16 %v912, %v910
    %v975 = vpack.c.b16 %v915, %v913
    %v976 = vpack.c.b16 %v916, %v914
    %v977 = vpack.c.b16 %v919, %v917
    %v978 = vpack.c.b16 %v920, %v918
    %v979 = vpack.c.b16 %v923, %v921
    %v980 = vpack.c.b16 %v924, %v922
    %v981 = vpack.c.b16 %v927, %v925
    %v982 = vpack.c.b16 %v928, %v926
    %v983 = vpack.c.b16 %v931, %v929
    %v984 = vpack.c.b16 %v932, %v930
    %v985 = vpack.c.b16 %v935, %v933
    %v986 = vpack.c.b16 %v936, %v934
    %v987 = vpack.c.b16 %v939, %v937
    %v988 = vpack.c.b16 %v940, %v938
    %v989 = vpack.c.b16 %v943, %v941
    %v990 = vpack.c.b16 %v944, %v942
    %v991 = vpack.c.b16 %v947, %v945
    %v992 = vpack.c.b16 %v948, %v946
    %v993 = vpack.c.b16 %v951, %v949
    %v994 = vpack.c.b16 %v952, %v950
    %v995 = vpack.c.b16 %v955, %v953
    %v996 = vpack.c.b16 %v956, %v954
    %v997 = vpack.c.b16 %v959, %v957
    %v998 = vpack.c.b16 %v960, %v958
    %v999 = vpack.c.b16 %v963, %v961
    %v1000 = vpack.c.b16 %v964, %v962
    %v1001 = vpack.c.b16 %v967, %v965
    %v1002 = vpack.c.b16 %v968, %v966
    %v1003 = vpack.c.b16 %v971, %v969
    %v1004 = vpack.c.b16 %v972, %v970
    %1037 = vmatpush.bf16.msra.mxu0 %v987
    %1038 = vmatpush.bf16.msra.mxu0 %v985
    %1039 = vmatpush.bf16.msra.mxu0 %v983
    %1040 = vmatpush.bf16.msra.mxu0 %v981
    %1041 = vmatpush.bf16.msra.mxu0 %v979
    %1042 = vmatpush.bf16.msra.mxu0 %v977
    %1043 = vmatpush.bf16.msra.mxu0 %v975
    %1044 = vmatpush.bf16.msra.mxu0 %v973
    %1045 = vmatmul.bf16.gmra.mxu0 %v870
    %v1046 = vpop.f32.mrf.mxu0
    %v1047 = vadd.f32 %v873, %v1046
    %v1048 = vpop.f32.mrf.mxu0
    %v1049 = vadd.f32 %v873, %v1048
    %1050 = vdwg.mxu0
    %1051 = vmatpush.bf16.msra.mxu0 %v1003
    %1052 = vmatpush.bf16.msra.mxu0 %v1001
    %1053 = vmatpush.bf16.msra.mxu0 %v999
    %1054 = vmatpush.bf16.msra.mxu0 %v997
    %1055 = vmatpush.bf16.msra.mxu0 %v995
    %1056 = vmatpush.bf16.msra.mxu0 %v993
    %1057 = vmatpush.bf16.msra.mxu0 %v991
    %1058 = vmatpush.bf16.msra.mxu0 %v989
    %1059 = vmatmul.bf16.gmra.mxu0 %v871
    %v1060 = vpop.f32.mrf.mxu0
    %v1061 = vadd.f32 %v1047, %v1060
    %v1062 = vpop.f32.mrf.mxu0
    %v1063 = vadd.f32 %v1049, %v1062
    %1064 = vdwg.mxu0
    %1065 = vmatpush.bf16.msra.mxu0 %v988
    %1066 = vmatpush.bf16.msra.mxu0 %v986
    %1067 = vmatpush.bf16.msra.mxu0 %v984
    %1068 = vmatpush.bf16.msra.mxu0 %v982
    %1069 = vmatpush.bf16.msra.mxu0 %v980
    %1070 = vmatpush.bf16.msra.mxu0 %v978
    %1071 = vmatpush.bf16.msra.mxu0 %v976
    %1072 = vmatpush.bf16.msra.mxu0 %v974
    %1073 = vmatmul.bf16.gmra.mxu0 %v870
    %v1074 = vpop.f32.mrf.mxu0
    %v1075 = vadd.f32 %v874, %v1074
    %v1076 = vpop.f32.mrf.mxu0
    %v1077 = vadd.f32 %v874, %v1076
    %1078 = vdwg.mxu0
    %1079 = vmatpush.bf16.msra.mxu0 %v1004
    %1080 = vmatpush.bf16.msra.mxu0 %v1002
    %1081 = vmatpush.bf16.msra.mxu0 %v1000
    %1082 = vmatpush.bf16.msra.mxu0 %v998
    %1083 = vmatpush.bf16.msra.mxu0 %v996
    %1084 = vmatpush.bf16.msra.mxu0 %v994
    %1085 = vmatpush.bf16.msra.mxu0 %v992
    %1086 = vmatpush.bf16.msra.mxu0 %v990
    %1087 = vmatmul.bf16.gmra.mxu0 %v871
    %v1088 = vpop.f32.mrf.mxu0
    %v1089 = vadd.f32 %v1075, %v1088
    %v1090 = vpop.f32.mrf.mxu0
    %v1091 = vadd.f32 %v1077, %v1090
    %1092 = vdwg.mxu0
    %vm1093 = vcmp.gt.f32.partialorder %v1061, 0.0
    %vm1094 = vcmp.gt.f32.partialorder %v1089, 0.0
    %vm1095 = vcmp.gt.f32.partialorder %v1063, 0.0
    %vm1096 = vcmp.gt.f32.partialorder %v1091, 0.0
    %v1097 = vmin.f32 %v1061, 0.0
    %v1098 = vmin.f32 %v1089, 0.0
    %v1099 = vmin.f32 %v1063, 0.0
    %v1100 = vmin.f32 %v1091, 0.0
    %v1101 = vmul.f32 %v1097, 1.442695
    %v1102 = vpow.pop %v1101
    %v1103 = vmul.f32 %v1098, 1.442695
    %v1104 = vpow.pop %v1103
    %v1105 = vmul.f32 %v1099, 1.442695
    %v1106 = vpow.pop %v1105
    %v1107 = vmul.f32 %v1100, 1.442695
    %v1108 = vpow.pop %v1107
    %v1109 = vsub.f32 %v1102, 1.0
    %v1110 = vsub.f32 %v1104, 1.0
    %v1111 = vsub.f32 %v1106, 1.0
    %v1112 = vsub.f32 %v1108, 1.0
    %v1113 = vsel %vm1093, %v1061, %v1109
    %v1114 = vsel %vm1094, %v1089, %v1110
    %v1115 = vsel %vm1095, %v1063, %v1111
    %v1116 = vsel %vm1096, %v1091, %v1112
    %v1118 = vperm.slane %v213, 0
    %v1119 = vperm.slane %v213, 1
    %v1122 = vpack.c.bf16 %v1118, %v1118
    %v1123 = vpack.c.bf16 %v1119, %v1119
    %v1124 = vpack.c.bf16 %v1115, %v1113
    %v1125 = vpack.c.bf16 %v1116, %v1114
    %1127 = vset.pattern.permute.xlu0 0
    %1128 = vperm.xlu0 %1127, %v215
    %v1129 = vpop.permute.xlu0 %1128
    %v1131 = vperm.slane %v1129, 0
    %1132 = vmatpush.bf16.xpose.msra.mxu0 0
    %1133 = vmatpush.bf16.xpose.msra.mxu0 0
    %1134 = vmatpush.bf16.xpose.msra.mxu0 0
    %1135 = vmatpush.bf16.xpose.msra.mxu0 0
    %1136 = vmatpush.bf16.xpose.msra.mxu0 0
    %1137 = vmatpush.bf16.xpose.msra.mxu0 0
    %1138 = vmatpush.bf16.xpose.msra.mxu0 0
    %1139 = vmatpush.bf16.xpose.msra.mxu0 %v1124
    %1140 = vmatmul.bf16.gmra.mxu0 %v1122
    %v1141 = vpop.f32.mrf.mxu0
    %v1142 = vadd.f32 %v1131, %v1141
    %v1143 = vpop.f32.mrf.mxu0
    %1144 = vdwg.mxu0
    %1145 = vmatpush.bf16.xpose.msra.mxu0 0
    %1146 = vmatpush.bf16.xpose.msra.mxu0 0
    %1147 = vmatpush.bf16.xpose.msra.mxu0 0
    %1148 = vmatpush.bf16.xpose.msra.mxu0 0
    %1149 = vmatpush.bf16.xpose.msra.mxu0 0
    %1150 = vmatpush.bf16.xpose.msra.mxu0 0
    %1151 = vmatpush.bf16.xpose.msra.mxu0 0
    %1152 = vmatpush.bf16.xpose.msra.mxu0 %v1125
    %1153 = vmatmul.bf16.gmra.mxu0 %v1123
    %v1154 = vpop.f32.mrf.mxu0
    %v1155 = vadd.f32 %v1142, %v1154
    %v1156 = vpop.f32.mrf.mxu0
    %1157 = vdwg.mxu0
    %vm1158 = vcmask 122880
    %1159 = vst.msk [vmem:[#allocation10] sm:$0x1] %vm1158, %v1155
    // Predicated region
    $region34: #{tpu_custom_call.1} parent=1 // pred_check
      _
    $region35: #{tpu_custom_call.1} parent=1 // pred_check_branch
      %1161 = sbr.rel (0) target = $region37
    $region36: #{tpu_custom_call.1} parent=1 // pred_region
      %1163 = vsyncadd [#allocation4], 0
      %s1165 = sshll.u32 [#allocation10], 4
      %s1166 = int_to_ptr.vmem [resolvable:$true] %s1165
      %s1167 = sshll.u32 %s4, 4
      %s1168 = int_to_ptr.hbm [resolvable:$true] %s1167
      %1170 = dma.vmem_to_hbm [thread:$0]  %s1166, 16, %s1168, [#allocation4]
    $region37: #{tpu_custom_call.1} parent=1 // pred_fallthru
      _
    // Predicated region
    $region38: #{tpu_custom_call.1} parent=1 // pred_check
      _
    $region39: #{tpu_custom_call.1} parent=1 // pred_check_branch
      %1172 = sbr.rel (0) target = $region41
    $region40: #{tpu_custom_call.1} parent=1 // pred_region
      %1174 = dma.done [#allocation4], 16
    $region41: #{tpu_custom_call.1} parent=1 // pred_fallthru
      _
    %1175 = vsyncpa [#allocation3], 1
    %1176 = vsyncpa [#allocation6], 1
    %1177 = vsyncpa [#allocation9], 1
    %1178 = vsyncpa [#allocation4], 1

</llo_original>
